<compile_context>
chip_gen: v7x
topology: tpu7x:2x2x1
jax: 0.10.0
libtpu: 0.0.40
codegen_flags: <defaults>
</compile_context>

<pallas_src>
import math
import functools

import jax
import jax.numpy as jnp
from jax.experimental import pallas as pl
from jax.experimental.pallas import tpu as pltpu


# ----------------------------------------------------------------------------
# Fused 1x1-conv kernel: one matmul + bias, no reduction grid, no scratch.
# ----------------------------------------------------------------------------
def _outconv_kernel(x_ref, w_ref, b_ref, o_ref):
    # x_ref: (1, Cin, HW)  -- one batch element, channels x flattened spatial
    # w_ref: (Cout, Cin)   -- pre-laid-out 1x1 conv weight
    # b_ref: (Cout, 1)     -- bias as a column, broadcast over spatial lanes
    # o_ref: (1, Cout, HW) -- lane-dense output (HW on the 128-lane axis)
    y = jnp.dot(w_ref[...], x_ref[0], preferred_element_type=jnp.float32)
    o_ref[0] = (y + b_ref[...]).astype(o_ref.dtype)


def out_conv(x, w_mat, b_col):
    """PyTorch OutConv.forward: 1x1 Conv2d with bias.

    x:     (N, Cin, H, W)  NCHW, float32
    w_mat: (Cout, Cin)     pre-reshaped conv weight
    b_col: (Cout, 1)       pre-reshaped conv bias
    returns (N, Cout, H, W)
    """
    N, Cin, H, W = x.shape
    Cout = w_mat.shape[0]
    HW = H * W

    # Free reshape (no transpose): channels stay the contraction axis,
    # flattened spatial becomes the lane axis.
    x3 = x.reshape(N, Cin, HW)

    # TODO(synk): for very large spatial sizes (HW*Cin*4B approaching the VMEM
    #             limit) add a second grid axis tiling HW in multiples of 128;
    #             at UNet-scale spatial sizes a full-HW block is optimal.
    out = pl.pallas_call(
        _outconv_kernel,
        out_shape=jax.ShapeDtypeStruct((N, Cout, HW), jnp.float32),
        grid_spec=pltpu.PrefetchScalarGridSpec(
            num_scalar_prefetch=0,
            grid=(N,),
            in_specs=[
                pl.BlockSpec((1, Cin, HW), lambda n: (n, 0, 0)),
                pl.BlockSpec((Cout, Cin), lambda n: (0, 0)),
                pl.BlockSpec((Cout, 1), lambda n: (0, 0)),
            ],
            out_specs=pl.BlockSpec((1, Cout, HW), lambda n: (n, 0, 0)),
        ),
        compiler_params=pltpu.CompilerParams(
            dimension_semantics=("parallel",),
        ),
    )(x3, w_mat, b_col)

    return out.reshape(N, Cout, H, W)


# ----------------------------------------------------------------------------
# Parameter init (PyTorch nn.Conv2d default init), with matmul-ready layouts
# produced ONCE here (hoisted out of the forward path per the perf review).
# ----------------------------------------------------------------------------
def init_outconv_params(key, in_channels, out_channels):
    kw, kb = jax.random.split(key)
    bound = 1.0 / math.sqrt(in_channels * 1 * 1)
    w = jax.random.uniform(kw, (out_channels, in_channels, 1, 1),
                           jnp.float32, -bound, bound)
    b = jax.random.uniform(kb, (out_channels,), jnp.float32, -bound, bound)
    return dict(
        w_mat=w.reshape(out_channels, in_channels),   # (Cout, Cin)
        b_col=b.reshape(out_channels, 1),             # (Cout, 1)
    )


# ----------------------------------------------------------------------------
if __name__ == "__main__":
    in_channels, out_channels = 8, 3          # UNet: OutConv(conv_size, n_classes)
    N, H, W = 2, 16, 16

    key = jax.random.PRNGKey(0)
    kx, kp = jax.random.split(key)

    x = jax.random.normal(kx, (N, in_channels, H, W), jnp.float32)
    params = init_outconv_params(kp, in_channels, out_channels)

    fwd = jax.jit(out_conv)
    out = jax.block_until_ready(fwd(x, params["w_mat"], params["b_col"]))

    assert out.shape == (N, out_channels, H, W), out.shape
    assert bool(jnp.all(jnp.isfinite(out)))

    # Pure-JAX reference with PyTorch Conv2d(k=1) semantics.
    ref = jnp.einsum("oi,nihw->nohw", params["w_mat"], x,
                     precision=jax.lax.Precision.HIGHEST)
    ref = ref + params["b_col"].reshape(1, out_channels, 1, 1)
    max_err = float(jnp.max(jnp.abs(out - ref)))
    assert jnp.allclose(out, ref, rtol=1e-4, atol=1e-4), max_err

    print("KERNEL_OK")
</pallas_src>

<mosaic_0001>
module attributes {stable_mosaic.version = 11 : i64} {
  func.func @_outconv_kernel(%arg0: i32, %arg1: memref<1x8x256xf32, #tpu.memory_space<vmem>>, %arg2: memref<3x8xf32, #tpu.memory_space<vmem>>, %arg3: memref<3x1xf32, #tpu.memory_space<vmem>>, %arg4: memref<1x3x256xf32, #tpu.memory_space<vmem>>) attributes {dimension_semantics = [#tpu.dimension_semantics<parallel>], iteration_bounds = array<i64: 2>, scalar_prefetch = 0 : i64, scratch_operands = 0 : i64, tpu.core_type = #tpu.core_type<tc>, window_params = [{transform_indices = @transform_0, window_bounds = array<i64: 1, 8, 256>}, {pipeline_mode = #tpu.pipeline_mode<synchronous>, transform_indices = @transform_1, window_bounds = array<i64: 3, 8>}, {pipeline_mode = #tpu.pipeline_mode<synchronous>, transform_indices = @transform_2, window_bounds = array<i64: 3, 1>}, {transform_indices = @transform_3, window_bounds = array<i64: 1, 3, 256>}]} {
    %c0 = arith.constant 0 : index
    %c0_0 = arith.constant 0 : index
    %0 = vector.load %arg2[%c0, %c0_0] : memref<3x8xf32, #tpu.memory_space<vmem>>, vector<3x8xf32>
    %c0_1 = arith.constant 0 : index
    %c0_2 = arith.constant 0 : index
    %c0_3 = arith.constant 0 : index
    %1 = vector.load %arg1[%c0_1, %c0_2, %c0_3] : memref<1x8x256xf32, #tpu.memory_space<vmem>>, vector<1x8x256xf32>
    %2 = vector.shape_cast %1 : vector<1x8x256xf32> to vector<8x256xf32>
    %cst = arith.constant dense<0.000000e+00> : vector<3x256xf32>
    %3 = tpu.matmul %0, %2, %cst {dimension_numbers = #tpu.dot_dimension_numbers<[1], [0], [0], [1], [0, 0, 1, 1], [], []>} : vector<3x8xf32>, vector<8x256xf32>, vector<3x256xf32> -> vector<3x256xf32>
    %c0_4 = arith.constant 0 : index
    %c0_5 = arith.constant 0 : index
    %4 = vector.load %arg3[%c0_4, %c0_5] : memref<3x1xf32, #tpu.memory_space<vmem>>, vector<3x1xf32>
    %5 = vector.broadcast %4 : vector<3x1xf32> to vector<3x256xf32>
    %6 = arith.addf %3, %5 : vector<3x256xf32>
    %c0_6 = arith.constant 0 : index
    %c0_7 = arith.constant 0 : index
    %c0_8 = arith.constant 0 : index
    %7 = vector.load %arg4[%c0_6, %c0_7, %c0_8] : memref<1x3x256xf32, #tpu.memory_space<vmem>>, vector<1x3x256xf32>
    %8 = vector.shape_cast %7 : vector<1x3x256xf32> to vector<3x256xf32>
    %9 = vector.shape_cast %6 : vector<3x256xf32> to vector<1x3x256xf32>
    tpu.vector_store %arg4[%c0_6, %c0_7, %c0_8], %9 {strides = array<i32>} : memref<1x3x256xf32, #tpu.memory_space<vmem>>, vector<1x3x256xf32>,
    return
  }
  func.func @transform_0(%arg0: i32) -> (i32, i32, i32) {
    %c0_i32 = arith.constant 0 : i32
    %c0_i32_0 = arith.constant 0 : i32
    %c0_i32_1 = arith.constant 0 : i32
    return %arg0, %c0_i32, %c0_i32_0 : i32, i32, i32
  }
  func.func @transform_1(%arg0: i32) -> (i32, i32) {
    %c0_i32 = arith.constant 0 : i32
    %c0_i32_0 = arith.constant 0 : i32
    %c0_i32_1 = arith.constant 0 : i32
    return %c0_i32, %c0_i32_0 : i32, i32
  }
  func.func @transform_2(%arg0: i32) -> (i32, i32) {
    %c0_i32 = arith.constant 0 : i32
    %c0_i32_0 = arith.constant 0 : i32
    %c0_i32_1 = arith.constant 0 : i32
    return %c0_i32, %c0_i32_0 : i32, i32
  }
  func.func @transform_3(%arg0: i32) -> (i32, i32, i32) {
    %c0_i32 = arith.constant 0 : i32
    %c0_i32_0 = arith.constant 0 : i32
    %c0_i32_1 = arith.constant 0 : i32
    return %arg0, %c0_i32, %c0_i32_0 : i32, i32, i32
  }
}

</mosaic_0001>

<llo_original>
// kernel: out_conv.1
$region0: #{out_conv.1}
  #allocation0 [shape = 'u32[]', space=smem, size = 0x4, offset = 0x4, fixed_abs, tag = 'smem constant byte address 0x4 - core index']
  #allocation1 [shape = 'u32[144,128]{1,0:T(1,128)}', space=vmem, size = 0x12000, scoped, tag = 'internal scratch']
  %s0 = inlined_call_operand.vmem [shape: f32[2,8,256], index: 0, kind: input, shape index: {}]
  %s1 = inlined_call_operand.vmem [shape: f32[3,8], index: 1, kind: input, shape index: {}]
  %s2 = inlined_call_operand.vmem [shape: f32[3,1], index: 2, kind: input, shape index: {}]
  %s3 = inlined_call_operand.vmem [shape: f32[2,3,256], index: 3, kind: output, shape index: {}]
  %s4 = sld [smem:[#allocation0]]
  $region45: #{out_conv.1} parent=0
    _
  %s6 = ssub.s32 1, %s4
  %s7 = scalar_select 0, %s6, %s4
  loop: start=0, step=1, limit=4
  $region2: #{out_conv.1} parent=0 // loop_pre_header
    _
  $region3: #{out_conv.1} parent=0 // loop_header
    %s9 = sphi 0, %s13
    %p10 = scmp.ge.s32.totalorder %s9, 4
    %s19 = sphi 0, %s21
    %s22 = sphi 0, %s19
    %s23 = sphi 0, %s22
    %s39 = sphi 0, %s23
    %s43 = sphi 0, %s43
    %s45 = sphi 0, %s43
    %s46 = sphi 0, %s45
    %s60 = sphi 0, %s46
    %s64 = sphi 0, %s64
    %s66 = sphi 0, %s64
    %s67 = sphi 0, %s66
    %s81 = sphi 0, %s67
    %s87 = sphi 0, %s89
    %s90 = sphi 0, %s87
    %s91 = sphi 0, %s90
    %s107 = sphi 0, %s91
  $region4: #{out_conv.1} parent=0 // loop_header_branch
    %12 = sbr.rel (%p10) target = $region8
  $region5: #{out_conv.1} parent=0 // loop_body
    %s14 = ssub.s32 %s9, 1
    %s15 = ssub.s32 %s9, 2
    %s16 = sadd.s32 %s9, 1
    %s17 = ssub.s32 %s9, %s16
    %p18 = scmp.eq.s32.totalorder %s17, 0
    %s20 = sadd.s32 %s19, 1
    %s21 = scalar_select %p18, %s19, %s20
    %p24 = pneg %p18
    %p25 = scmp.eq.s32.totalorder %s9, 1
    %p26 = por %p24, %p25
    %p27 = scmp.ne.s32.totalorder %s19, %s22
    %p28 = scmp.eq.s32.totalorder %s9, 0
    %p29 = por %p27, %p28
    %p30 = scmp.ne.s32.totalorder %s19, %s22
    %p31 = scmp.eq.s32.totalorder %s14, 1
    %p32 = por %p30, %p31
    %p33 = scmp.ne.s32.totalorder %s22, %s23
    %p34 = scmp.eq.s32.totalorder %s14, 0
    %p35 = por %p33, %p34
    %p36 = scmp.ne.s32.totalorder %s22, %s23
    %p37 = scmp.eq.s32.totalorder %s15, 1
    %p38 = por %p36, %p37
    %p40 = scmp.ne.s32.totalorder %s23, %s39
    %p41 = scmp.eq.s32.totalorder %s15, 0
    %p42 = por %p40, %p41
    %s44 = sadd.s32 %s43, 1
    %p47 = scmp.eq.s32.totalorder %s9, 1
    %p48 = scmp.ne.s32.totalorder %s43, %s45
    %p49 = scmp.eq.s32.totalorder %s9, 0
    %p50 = por %p48, %p49
    %p51 = scmp.ne.s32.totalorder %s43, %s45
    %p52 = scmp.eq.s32.totalorder %s14, 1
    %p53 = por %p51, %p52
    %p54 = scmp.ne.s32.totalorder %s45, %s46
    %p55 = scmp.eq.s32.totalorder %s14, 0
    %p56 = por %p54, %p55
    %p57 = scmp.ne.s32.totalorder %s45, %s46
    %p58 = scmp.eq.s32.totalorder %s15, 1
    %p59 = por %p57, %p58
    %p61 = scmp.ne.s32.totalorder %s46, %s60
    %p62 = scmp.eq.s32.totalorder %s15, 0
    %p63 = por %p61, %p62
    %s65 = sadd.s32 %s64, 1
    %p68 = scmp.eq.s32.totalorder %s9, 1
    %p69 = scmp.ne.s32.totalorder %s64, %s66
    %p70 = scmp.eq.s32.totalorder %s9, 0
    %p71 = por %p69, %p70
    %p72 = scmp.ne.s32.totalorder %s64, %s66
    %p73 = scmp.eq.s32.totalorder %s14, 1
    %p74 = por %p72, %p73
    %p75 = scmp.ne.s32.totalorder %s66, %s67
    %p76 = scmp.eq.s32.totalorder %s14, 0
    %p77 = por %p75, %p76
    %p78 = scmp.ne.s32.totalorder %s66, %s67
    %p79 = scmp.eq.s32.totalorder %s15, 1
    %p80 = por %p78, %p79
    %p82 = scmp.ne.s32.totalorder %s67, %s81
    %p83 = scmp.eq.s32.totalorder %s15, 0
    %p84 = por %p82, %p83
    %s85 = ssub.s32 %s9, %s16
    %p86 = scmp.eq.s32.totalorder %s85, 0
    %s88 = sadd.s32 %s87, 1
    %s89 = scalar_select %p86, %s87, %s88
    %p92 = pneg %p86
    %p93 = scmp.eq.s32.totalorder %s9, 1
    %p94 = por %p92, %p93
    %p95 = scmp.ne.s32.totalorder %s87, %s90
    %p96 = scmp.eq.s32.totalorder %s9, 0
    %p97 = por %p95, %p96
    %p98 = scmp.ne.s32.totalorder %s87, %s90
    %p99 = scmp.eq.s32.totalorder %s14, 1
    %p100 = por %p98, %p99
    %p101 = scmp.ne.s32.totalorder %s90, %s91
    %p102 = scmp.eq.s32.totalorder %s14, 0
    %p103 = por %p101, %p102
    %p104 = scmp.ne.s32.totalorder %s90, %s91
    %p105 = scmp.eq.s32.totalorder %s15, 1
    %p106 = por %p104, %p105
    %p108 = scmp.ne.s32.totalorder %s91, %s107
    %p109 = scmp.eq.s32.totalorder %s15, 0
    %p110 = por %p108, %p109
    %p111 = scmp.le.s32.totalorder 1, %s9
    %p112 = scmp.lt.s32.totalorder %s9, 3
    %p113 = pnand %p111, %p112
    %p114 = pneg %p113
    // Predicated region
    $region9: #{out_conv.1} parent=5 // pred_check
      _
    $region10: #{out_conv.1} parent=5 // pred_check_branch
      %116 = sbr.rel (%p113) target = $region12
    $region11: #{out_conv.1} parent=5 // pred_region
      %s117 = ssub.s32 %s9, 1
      // Predicated region
      $region13: #{out_conv.1} parent=11 // pred_check
        %p118 = pneg %p56
      $region14: #{out_conv.1} parent=11 // pred_check_branch
        %120 = sbr.rel (%p118) target = $region16
      $region15: #{out_conv.1} parent=11 // pred_region
        _
      $region16: #{out_conv.1} parent=11 // pred_fallthru
        _
      // Predicated region
      $region17: #{out_conv.1} parent=11 // pred_check
        %p121 = pneg %p77
      $region18: #{out_conv.1} parent=11 // pred_check_branch
        %123 = sbr.rel (%p121) target = $region20
      $region19: #{out_conv.1} parent=11 // pred_region
        _
      $region20: #{out_conv.1} parent=11 // pred_fallthru
        _
    $region12: #{out_conv.1} parent=5 // pred_fallthru
      _
    %p124 = scmp.lt.s32.totalorder %s9, 2
    // Predicated region
    $region21: #{out_conv.1} parent=5 // pred_check
      %p125 = pneg %p124
    $region22: #{out_conv.1} parent=5 // pred_check_branch
      %127 = sbr.rel (%p125) target = $region24
    $region23: #{out_conv.1} parent=5 // pred_region
      // Predicated region
      $region25: #{out_conv.1} parent=23 // pred_check
        %p128 = pneg %p29
      $region26: #{out_conv.1} parent=23 // pred_check_branch
        %130 = sbr.rel (%p128) target = $region28
      $region27: #{out_conv.1} parent=23 // pred_region
        %p131 = scmp.lt.s32.totalorder %s9, 1
        %s132 = scalar_select %p131, %s9, 1
        %s133 = smul.addr %s132, 2
        %s134 = smul.addr %s133, 8
        %s135 = scalar_lea.vmem %s0, %s134
      $region28: #{out_conv.1} parent=23 // pred_fallthru
        _
    $region24: #{out_conv.1} parent=5 // pred_fallthru
      _
    %p136 = scmp.le.s32.totalorder 1, %s9
    %p137 = scmp.lt.s32.totalorder %s9, 3
    %p138 = pnand %p136, %p137
    %p139 = pneg %p138
    // Predicated region
    $region29: #{out_conv.1} parent=5 // pred_check
      _
    $region30: #{out_conv.1} parent=5 // pred_check_branch
      %141 = sbr.rel (%p138) target = $region32
    $region31: #{out_conv.1} parent=5 // pred_region
      %s142 = ssub.s32 %s9, 1
      %p143 = scmp.lt.s32.totalorder %s14, 1
      %s144 = scalar_select %p143, %s14, 1
      %s145 = smul.addr %s144, 2
      %s146 = smul.addr %s145, 8
      %s147 = scalar_lea.vmem %s0, %s146
      %p148 = pneg %p35
      %p149 = pneg %p32
      %p150 = pneg %p56
      %p151 = pneg %p53
      %p152 = pneg %p77
      %p153 = pneg %p74
      %p154 = pneg %p103
      %p155 = pneg %p100
      %p156 = scmp.lt.s32.totalorder %s14, 1
      %s157 = scalar_select %p156, %s14, 1
      %s158 = smul.addr %s157, 2
      %s159 = smul.addr %s158, 4
      %s160 = scalar_lea.vmem %s3, %s159
      %p161 = scmp.lt.s32.totalorder %s14, 1
      %s162 = scalar_select %p161, %s14, 1
      %s163 = smul.addr %s162, 2
      %s164 = smul.addr %s163, 8
      %s165 = scalar_lea.vmem %s0, %s164
      %p166 = scmp.lt.s32.totalorder %s14, 1
      %s167 = scalar_select %p166, %s14, 1
      %s168 = smul.addr %s167, 2
      %s169 = smul.addr %s168, 4
      %s170 = scalar_lea.vmem %s3, %s169
      %v171 = vld [vmem:[%s1] sm:$0x7]
      %v172 = vld [vmem:[%s165] sm:$0xff]
      %v173 = vld [vmem:[%s165 + $0x8] sm:$0xff]
      %v174 = vld [vmem:[%s2] sm:$0x7]
      %176 = vset.pattern.permute.xlu0 0
      %177 = vperm.xlu0 %176, %v174
      %v178 = vpop.permute.xlu0 %177
      %vm180 = vcmask 64512
      %v182 = vsel %vm180, %v171, 0
      %184 = vmatprep.subr.mxu0 %v173
      %185 = vmatpush1.msra.mxu0 %v172
      %186 = vmatprep.subr.mxu0 0.0
      %187 = vmatpush1.msra.mxu0 0.0
      %188 = vmatprep.subr.mxu0 0.0
      %189 = vmatpush1.msra.mxu0 0.0
      %190 = vmatprep.subr.mxu0 0.0
      %191 = vmatpush1.msra.mxu0 0.0
      %192 = vmatprep.subr.mxu0 0.0
      %193 = vmatpush1.msra.mxu0 0.0
      %194 = vmatprep.subr.mxu0 0.0
      %195 = vmatpush1.msra.mxu0 0.0
      %196 = vmatprep.subr.mxu0 0.0
      %197 = vmatpush1.msra.mxu0 0.0
      %198 = vmatprep.subr.mxu0 0.0
      %199 = vmatpush1.msra.mxu0 0.0
      %200 = vmatprep.subr.mxu0 0.0
      %201 = vmatpush1.msra.mxu0 0.0
      %202 = vmatprep.subr.mxu0 0.0
      %203 = vmatpush1.msra.mxu0 0.0
      %204 = vmatprep.subr.mxu0 0.0
      %205 = vmatpush1.msra.mxu0 0.0
      %206 = vmatprep.subr.mxu0 0.0
      %207 = vmatpush1.msra.mxu0 0.0
      %208 = vmatprep.subr.mxu0 0.0
      %209 = vmatpush1.msra.mxu0 0.0
      %210 = vmatprep.subr.mxu0 0.0
      %211 = vmatpush1.msra.mxu0 0.0
      %212 = vmatprep.subr.mxu0 0.0
      %213 = vmatpush1.msra.mxu0 0.0
      %214 = vmatprep.subr.mxu0 0.0
      %215 = vmatpush1.msra.mxu0 0.0
      %216 = vmatprep.subr.mxu0 0.0
      %217 = vmatpush1.msra.mxu0 0.0
      %218 = vmatprep.subr.mxu0 0.0
      %219 = vmatpush1.msra.mxu0 0.0
      %220 = vmatprep.subr.mxu0 0.0
      %221 = vmatpush1.msra.mxu0 0.0
      %222 = vmatprep.subr.mxu0 0.0
      %223 = vmatpush1.msra.mxu0 0.0
      %224 = vmatprep.subr.mxu0 0.0
      %225 = vmatpush1.msra.mxu0 0.0
      %226 = vmatprep.subr.mxu0 0.0
      %227 = vmatpush1.msra.mxu0 0.0
      %228 = vmatprep.subr.mxu0 0.0
      %229 = vmatpush1.msra.mxu0 0.0
      %230 = vmatprep.subr.mxu0 0.0
      %231 = vmatpush1.msra.mxu0 0.0
      %232 = vmatprep.subr.mxu0 0.0
      %233 = vmatpush1.msra.mxu0 0.0
      %234 = vmatprep.subr.mxu0 0.0
      %235 = vmatpush1.msra.mxu0 0.0
      %236 = vmatprep.subr.mxu0 0.0
      %237 = vmatpush1.msra.mxu0 0.0
      %238 = vmatprep.subr.mxu0 0.0
      %239 = vmatpush1.msra.mxu0 0.0
      %240 = vmatprep.subr.mxu0 0.0
      %241 = vmatpush1.msra.mxu0 0.0
      %242 = vmatprep.subr.mxu0 0.0
      %243 = vmatpush1.msra.mxu0 0.0
      %244 = vmatprep.subr.mxu0 0.0
      %245 = vmatpush1.msra.mxu0 0.0
      %246 = vmatprep.subr.mxu0 0.0
      %247 = vmatpush1.msra.mxu0 0.0
      %248 = vmatprep.mubr.f32.mxu0 0.0
      %249 = vmatmul.mubr.f32.gmra.mrb[0].mxu0 %v182
      %v250 = vpop.f32.mrb[0].mxu0
      %v251 = vadd.f32 %v178, %v250
      %v252 = vpop.f32.mrb[0].mxu0
      %v253 = vadd.f32 %v178, %v252
      %254 = vdwg.mxu0
      %v257 = vcombine.low %v251, %v253
      %259 = vst [vmem:[%s170] sm:$0x77] %v257
      %p260 = scmp.lt.s32.totalorder %s14, 1
      %s261 = scalar_select %p260, %s14, 1
      %s262 = smul.addr %s261, 2
      %s263 = smul.addr %s262, 4
      %s264 = scalar_lea.vmem %s3, %s263
      // Predicated region
      $region33: #{out_conv.1} parent=31 // pred_check
        %p265 = pneg %p100
      $region34: #{out_conv.1} parent=31 // pred_check_branch
        %267 = sbr.rel (%p265) target = $region36
      $region35: #{out_conv.1} parent=31 // pred_region
        _
      $region36: #{out_conv.1} parent=31 // pred_fallthru
        _
    $region32: #{out_conv.1} parent=5 // pred_fallthru
      _
    %p268 = scmp.le.s32.totalorder 2, %s9
    // Predicated region
    $region37: #{out_conv.1} parent=5 // pred_check
      %p269 = pneg %p268
    $region38: #{out_conv.1} parent=5 // pred_check_branch
      %271 = sbr.rel (%p269) target = $region40
    $region39: #{out_conv.1} parent=5 // pred_region
      %s272 = ssub.s32 %s9, 2
      // Predicated region
      $region41: #{out_conv.1} parent=39 // pred_check
        %p273 = pneg %p106
      $region42: #{out_conv.1} parent=39 // pred_check_branch
        %275 = sbr.rel (%p273) target = $region44
      $region43: #{out_conv.1} parent=39 // pred_region
        %p276 = scmp.lt.s32.totalorder %s15, 1
        %s277 = scalar_select %p276, %s15, 1
        %s278 = smul.addr %s277, 2
        %s279 = smul.addr %s278, 4
        %s280 = scalar_lea.vmem %s3, %s279
      $region44: #{out_conv.1} parent=39 // pred_fallthru
        _
    $region40: #{out_conv.1} parent=5 // pred_fallthru
      _
  $region6: #{out_conv.1} parent=0 // loop_footer
    %s13 = sadd.s32 1, %s9
  $region7: #{out_conv.1} parent=0 // loop_footer_branch
    %8 = sbr.rel target = $region3
  $region8: #{out_conv.1} parent=0 // loop_exit
    _

</llo_original>
